<compile_context>
chip_gen: v6e
topology: v6e:2x2x1
jax: 0.10.0
libtpu: 0.0.40
codegen_flags: <defaults>
</compile_context>

<pallas_src>
import functools

import jax
import jax.numpy as jnp
from jax.experimental import pallas as pl
from jax.experimental.pallas import tpu as pltpu


def _sobel_kernel(x_ref, o_ref, *, w, fold):
    """One image per grid step, folded layout (1, H//fold, fold*W)."""
    x = x_ref[0].astype(jnp.float32)              # (nR, FW)
    nR, FW = x.shape

    lane = jax.lax.broadcasted_iota(jnp.int32, (nR, FW), 1)
    sub = jax.lax.broadcasted_iota(jnp.int32, (nR, FW), 0)

    # ---- row (H-direction) neighbours x[r-1, j] / x[r+1, j], zero at image top/bottom.
    if fold == 1:
        x_up = jnp.where(sub == 0, 0.0, pltpu.roll(x, 1 % nR, axis=0))
        x_dn = jnp.where(sub == nR - 1, 0.0, pltpu.roll(x, (nR - 1) % nR, axis=0))
    else:
        a = pltpu.roll(x, w, axis=1)               # row r-1 for folded sub-rows k >= 1
        x_up = jnp.where(lane >= w, a, pltpu.roll(a, 1 % nR, axis=0))
        x_up = jnp.where((sub == 0) & (lane < w), 0.0, x_up)
        c = pltpu.roll(x, FW - w, axis=1)          # row r+1 for folded sub-rows k <= fold-2
        x_dn = jnp.where(lane < FW - w, c, pltpu.roll(c, (nR - 1) % nR, axis=0))
        x_dn = jnp.where((sub == nR - 1) & (lane >= FW - w), 0.0, x_dn)

    # ---- separable Sobel (cross-correlation; matches F.conv2d with padding=1)
    smooth = x_up + 2.0 * x + x_dn     # gx = smooth[:, j+1] - smooth[:, j-1]
    diff = x_up - x_dn                 # gy = diff[:, j-1] + 2*diff[:, j] + diff[:, j+1]

    left_edge = (lane % w) == 0
    right_edge = (lane % w) == (w - 1)

    def shift_left(t):                 # t[:, j-1], zero at image column 0
        return jnp.where(left_edge, 0.0, pltpu.roll(t, 1 % FW, axis=1))

    def shift_right(t):                # t[:, j+1], zero at image column W-1
        return jnp.where(right_edge, 0.0, pltpu.roll(t, (FW - 1) % FW, axis=1))

    gx = shift_right(smooth) - shift_left(smooth)
    gy = shift_left(diff) + 2.0 * diff + shift_right(diff)

    o_ref[0] = (jnp.abs(gx) + jnp.abs(gy)).astype(o_ref.dtype)


def _pick_fold(h, w):
    """Smallest divisor f of h making lane dim f*w a multiple of 128 (preferred),
    else >= 128, else fold the whole image."""
    if w >= 128:
        return 1
    best = None
    for f in range(1, h + 1):
        if h % f:
            continue
        if (f * w) % 128 == 0:
            return f
        if best is None and f * w >= 128:
            best = f
    return best if best is not None else h


def sobelxy(x):
    """x: (N, 1, H, W) -> (N, 1, H, W); |Sobel_x(x)| + |Sobel_y(x)| with zero padding=1."""
    N, C, H, W = x.shape
    assert C == 1, "Sobelxy conv weights have in_channels=1"

    fold = _pick_fold(H, W)
    nR, FW = H // fold, fold * W
    xf = x.reshape(N, nR, FW)                      # contiguous reshape -> no extra HBM pass

    cparams = {"dimension_semantics": ("parallel",)}
    est = nR * FW * 4 * 12                         # 2x2 dbuf I/O + ~8 f32 temporaries
    if est > 32 * 1024 * 1024:
        cparams["vmem_limit_bytes"] = min(est, 100 * 1024 * 1024)

    out = pl.pallas_call(
        functools.partial(_sobel_kernel, w=W, fold=fold),
        out_shape=jax.ShapeDtypeStruct((N, nR, FW), x.dtype),
        grid_spec=pltpu.PrefetchScalarGridSpec(
            num_scalar_prefetch=0,
            grid=(N,),
            in_specs=[pl.BlockSpec((1, nR, FW), lambda n: (n, 0, 0))],
            out_specs=pl.BlockSpec((1, nR, FW), lambda n: (n, 0, 0)),
        ),
        compiler_params=pltpu.CompilerParams(**cparams),
    )(xf)
    return out.reshape(N, 1, H, W)


def l_ssim9_weights(images):
    """Sobel-gradient weights of L_SSIM9.forward for the 9 source images
    [A, B, C, D, E, H, I, F, G], each (N,1,H,W). Matches the PyTorch expression
    weight_X = mean(gX)/(mean(gA)+mean(gB)) + mean(gC)+...+mean(gG).
    # TODO(synk): ssim(image_X, image_fused) comes from an external loss_ssim.py
    # not included in the spec, so the final Loss_SSIM value is not formed here."""
    means = [jnp.mean(sobelxy(im)) for im in images]
    denom = means[0] + means[1]
    tail = sum(means[2:])
    return [m / denom + tail for m in means]


def _reference(x):
    kx = jnp.array([[-1., 0., 1.], [-2., 0., 2.], [-1., 0., 1.]], jnp.float32)
    ky = jnp.array([[1., 2., 1.], [0., 0., 0.], [-1., -2., -1.]], jnp.float32)
    wgt = jnp.stack([kx, ky])[:, None, :, :]
    y = jax.lax.conv_general_dilated(
        x.astype(jnp.float32), wgt, window_strides=(1, 1),
        padding=((1, 1), (1, 1)), dimension_numbers=("NCHW", "OIHW", "NCHW"))
    return jnp.abs(y[:, 0:1]) + jnp.abs(y[:, 1:2])


if __name__ == "__main__":
    key = jax.random.PRNGKey(0)
    keys = jax.random.split(key, 11)

    # folded path: W=16 < 128 -> fold=8, lane dim 128
    x = jax.random.normal(keys[0], (2, 1, 16, 16), dtype=jnp.float32)
    out = sobelxy(x)
    jax.block_until_ready(out)
    assert out.shape == x.shape
    assert jnp.allclose(out, _reference(x), atol=1e-5, rtol=1e-5), "mismatch (folded path)"

    # unfolded path: W=128 -> fold=1
    x2 = jax.random.normal(keys[1], (1, 1, 8, 128), dtype=jnp.float32)
    out2 = sobelxy(x2)
    jax.block_until_ready(out2)
    assert jnp.allclose(out2, _reference(x2), atol=1e-5, rtol=1e-5), "mismatch (unfolded path)"

    # L_SSIM9 gradient-weight path (9 source images)
    imgs = [jax.random.normal(k, (2, 1, 16, 16), dtype=jnp.float32) for k in keys[2:]]
    weights = l_ssim9_weights(imgs)
    jax.block_until_ready(weights)
    ref_means = [jnp.mean(_reference(im)) for im in imgs]
    ref_den = ref_means[0] + ref_means[1]
    ref_tail = sum(ref_means[2:])
    ref_weights = [m / ref_den + ref_tail for m in ref_means]
    for got, want in zip(weights, ref_weights):
        assert jnp.allclose(got, want, atol=1e-4, rtol=1e-4), "mismatch (L_SSIM9 weights)"

    print("KERNEL_OK")
</pallas_src>

<mosaic_0001>
module attributes {stable_mosaic.version = 11 : i64} {
  func.func @_sobel_kernel(%arg0: i32, %arg1: memref<1x2x128xf32, #tpu.memory_space<vmem>>, %arg2: memref<1x2x128xf32, #tpu.memory_space<vmem>>) attributes {dimension_semantics = [#tpu.dimension_semantics<parallel>], iteration_bounds = array<i64: 2>, scalar_prefetch = 0 : i64, scratch_operands = 0 : i64, tpu.core_type = #tpu.core_type<tc>, window_params = [{transform_indices = @transform_0, window_bounds = array<i64: 1, 2, 128>}, {transform_indices = @transform_1, window_bounds = array<i64: 1, 2, 128>}]} {
    %c0 = arith.constant 0 : index
    %c0_0 = arith.constant 0 : index
    %c0_1 = arith.constant 0 : index
    %0 = vector.load %arg1[%c0, %c0_0, %c0_1] : memref<1x2x128xf32, #tpu.memory_space<vmem>>, vector<1x2x128xf32>
    %1 = vector.shape_cast %0 : vector<1x2x128xf32> to vector<2x128xf32>
    %2 = tpu.iota {dimensions = array<i32: 1>} : vector<2x128xi32>
    %3 = tpu.iota {dimensions = array<i32: 0>} : vector<2x128xi32>
    %c16_i32 = arith.constant 16 : i32
    %4 = tpu.dynamic_rotate %1 by %c16_i32 dim 1 : vector<2x128xf32>, i32 -> vector<2x128xf32>
    %c16_i32_2 = arith.constant 16 : i32
    %5 = vector.broadcast %c16_i32_2 : i32 to vector<2x128xi32>
    %6 = arith.cmpi sge, %2, %5 : vector<2x128xi32>
    %c1_i32 = arith.constant 1 : i32
    %7 = tpu.dynamic_rotate %4 by %c1_i32 dim 0 : vector<2x128xf32>, i32 -> vector<2x128xf32>
    %8 = arith.select %6, %4, %7 : vector<2x128xi1>, vector<2x128xf32>
    %c0_i32 = arith.constant 0 : i32
    %9 = vector.broadcast %c0_i32 : i32 to vector<2x128xi32>
    %10 = arith.cmpi eq, %3, %9 : vector<2x128xi32>
    %c16_i32_3 = arith.constant 16 : i32
    %11 = vector.broadcast %c16_i32_3 : i32 to vector<2x128xi32>
    %12 = arith.cmpi slt, %2, %11 : vector<2x128xi32>
    %13 = arith.andi %10, %12 : vector<2x128xi1>
    %cst = arith.constant 0.000000e+00 : f32
    %14 = vector.broadcast %cst : f32 to vector<2x128xf32>
    %15 = arith.select %13, %14, %8 : vector<2x128xi1>, vector<2x128xf32>
    %c112_i32 = arith.constant 112 : i32
    %16 = tpu.dynamic_rotate %1 by %c112_i32 dim 1 : vector<2x128xf32>, i32 -> vector<2x128xf32>
    %c112_i32_4 = arith.constant 112 : i32
    %17 = vector.broadcast %c112_i32_4 : i32 to vector<2x128xi32>
    %18 = arith.cmpi slt, %2, %17 : vector<2x128xi32>
    %c1_i32_5 = arith.constant 1 : i32
    %19 = tpu.dynamic_rotate %16 by %c1_i32_5 dim 0 : vector<2x128xf32>, i32 -> vector<2x128xf32>
    %20 = arith.select %18, %16, %19 : vector<2x128xi1>, vector<2x128xf32>
    %c1_i32_6 = arith.constant 1 : i32
    %21 = vector.broadcast %c1_i32_6 : i32 to vector<2x128xi32>
    %22 = arith.cmpi eq, %3, %21 : vector<2x128xi32>
    %c112_i32_7 = arith.constant 112 : i32
    %23 = vector.broadcast %c112_i32_7 : i32 to vector<2x128xi32>
    %24 = arith.cmpi sge, %2, %23 : vector<2x128xi32>
    %25 = arith.andi %22, %24 : vector<2x128xi1>
    %cst_8 = arith.constant 0.000000e+00 : f32
    %26 = vector.broadcast %cst_8 : f32 to vector<2x128xf32>
    %27 = arith.select %25, %26, %20 : vector<2x128xi1>, vector<2x128xf32>
    %cst_9 = arith.constant 2.000000e+00 : f32
    %28 = vector.broadcast %cst_9 : f32 to vector<2x128xf32>
    %29 = arith.mulf %28, %1 : vector<2x128xf32>
    %30 = arith.addf %15, %29 : vector<2x128xf32>
    %31 = arith.addf %30, %27 : vector<2x128xf32>
    %32 = arith.subf %15, %27 : vector<2x128xf32>
    %c16_i32_10 = arith.constant 16 : i32
    %c0_i32_11 = arith.constant 0 : i32
    %33 = arith.cmpi eq, %c16_i32_10, %c0_i32_11 : i32
    %c1_i32_12 = arith.constant 1 : i32
    %34 = arith.select %33, %c1_i32_12, %c16_i32_10 : i32
    %35 = vector.broadcast %34 : i32 to vector<2x128xi32>
    %36 = arith.remsi %2, %35 : vector<2x128xi32>
    %c0_i32_13 = arith.constant 0 : i32
    %37 = vector.broadcast %c0_i32_13 : i32 to vector<2x128xi32>
    %38 = arith.cmpi ne, %36, %37 : vector<2x128xi32>
    %c0_i32_14 = arith.constant 0 : i32
    %39 = vector.broadcast %c0_i32_14 : i32 to vector<2x128xi32>
    %40 = arith.cmpi slt, %36, %39 : vector<2x128xi32>
    %c0_i32_15 = arith.constant 0 : i32
    %41 = arith.cmpi slt, %34, %c0_i32_15 : i32
    %42 = vector.broadcast %41 : i1 to vector<2x128xi1>
    %43 = vector.broadcast %42 : vector<2x128xi1> to vector<2x128xi1>
    %44 = arith.xori %40, %43 : vector<2x128xi1>
    %45 = arith.andi %44, %38 : vector<2x128xi1>
    %46 = vector.broadcast %34 : i32 to vector<2x128xi32>
    %47 = arith.addi %36, %46 : vector<2x128xi32>
    %48 = arith.select %45, %47, %36 : vector<2x128xi1>, vector<2x128xi32>
    %c0_i32_16 = arith.constant 0 : i32
    %49 = vector.broadcast %c0_i32_16 : i32 to vector<2x128xi32>
    %50 = arith.cmpi eq, %48, %49 : vector<2x128xi32>
    %c16_i32_17 = arith.constant 16 : i32
    %c0_i32_18 = arith.constant 0 : i32
    %51 = arith.cmpi eq, %c16_i32_17, %c0_i32_18 : i32
    %c1_i32_19 = arith.constant 1 : i32
    %52 = arith.select %51, %c1_i32_19, %c16_i32_17 : i32
    %53 = vector.broadcast %52 : i32 to vector<2x128xi32>
    %54 = arith.remsi %2, %53 : vector<2x128xi32>
    %c0_i32_20 = arith.constant 0 : i32
    %55 = vector.broadcast %c0_i32_20 : i32 to vector<2x128xi32>
    %56 = arith.cmpi ne, %54, %55 : vector<2x128xi32>
    %c0_i32_21 = arith.constant 0 : i32
    %57 = vector.broadcast %c0_i32_21 : i32 to vector<2x128xi32>
    %58 = arith.cmpi slt, %54, %57 : vector<2x128xi32>
    %c0_i32_22 = arith.constant 0 : i32
    %59 = arith.cmpi slt, %52, %c0_i32_22 : i32
    %60 = vector.broadcast %59 : i1 to vector<2x128xi1>
    %61 = vector.broadcast %60 : vector<2x128xi1> to vector<2x128xi1>
    %62 = arith.xori %58, %61 : vector<2x128xi1>
    %63 = arith.andi %62, %56 : vector<2x128xi1>
    %64 = vector.broadcast %52 : i32 to vector<2x128xi32>
    %65 = arith.addi %54, %64 : vector<2x128xi32>
    %66 = arith.select %63, %65, %54 : vector<2x128xi1>, vector<2x128xi32>
    %c15_i32 = arith.constant 15 : i32
    %67 = vector.broadcast %c15_i32 : i32 to vector<2x128xi32>
    %68 = arith.cmpi eq, %66, %67 : vector<2x128xi32>
    %c127_i32 = arith.constant 127 : i32
    %69 = tpu.dynamic_rotate %31 by %c127_i32 dim 1 : vector<2x128xf32>, i32 -> vector<2x128xf32>
    %cst_23 = arith.constant 0.000000e+00 : f32
    %70 = vector.broadcast %cst_23 : f32 to vector<2x128xf32>
    %71 = arith.select %68, %70, %69 : vector<2x128xi1>, vector<2x128xf32>
    %c1_i32_24 = arith.constant 1 : i32
    %72 = tpu.dynamic_rotate %31 by %c1_i32_24 dim 1 : vector<2x128xf32>, i32 -> vector<2x128xf32>
    %cst_25 = arith.constant 0.000000e+00 : f32
    %73 = vector.broadcast %cst_25 : f32 to vector<2x128xf32>
    %74 = arith.select %50, %73, %72 : vector<2x128xi1>, vector<2x128xf32>
    %75 = arith.subf %71, %74 : vector<2x128xf32>
    %c1_i32_26 = arith.constant 1 : i32
    %76 = tpu.dynamic_rotate %32 by %c1_i32_26 dim 1 : vector<2x128xf32>, i32 -> vector<2x128xf32>
    %cst_27 = arith.constant 0.000000e+00 : f32
    %77 = vector.broadcast %cst_27 : f32 to vector<2x128xf32>
    %78 = arith.select %50, %77, %76 : vector<2x128xi1>, vector<2x128xf32>
    %cst_28 = arith.constant 2.000000e+00 : f32
    %79 = vector.broadcast %cst_28 : f32 to vector<2x128xf32>
    %80 = arith.mulf %79, %32 : vector<2x128xf32>
    %81 = arith.addf %78, %80 : vector<2x128xf32>
    %c127_i32_29 = arith.constant 127 : i32
    %82 = tpu.dynamic_rotate %32 by %c127_i32_29 dim 1 : vector<2x128xf32>, i32 -> vector<2x128xf32>
    %cst_30 = arith.constant 0.000000e+00 : f32
    %83 = vector.broadcast %cst_30 : f32 to vector<2x128xf32>
    %84 = arith.select %68, %83, %82 : vector<2x128xi1>, vector<2x128xf32>
    %85 = arith.addf %81, %84 : vector<2x128xf32>
    %86 = math.absf %75 : vector<2x128xf32>
    %87 = math.absf %85 : vector<2x128xf32>
    %88 = arith.addf %86, %87 : vector<2x128xf32>
    %c0_31 = arith.constant 0 : index
    %c0_32 = arith.constant 0 : index
    %c0_33 = arith.constant 0 : index
    %89 = vector.load %arg2[%c0_31, %c0_32, %c0_33] : memref<1x2x128xf32, #tpu.memory_space<vmem>>, vector<1x2x128xf32>
    %90 = vector.shape_cast %89 : vector<1x2x128xf32> to vector<2x128xf32>
    %91 = vector.shape_cast %88 : vector<2x128xf32> to vector<1x2x128xf32>
    tpu.vector_store %arg2[%c0_31, %c0_32, %c0_33], %91 {strides = array<i32>} : memref<1x2x128xf32, #tpu.memory_space<vmem>>, vector<1x2x128xf32>,
    return
  }
  func.func @transform_0(%arg0: i32) -> (i32, i32, i32) {
    %c0_i32 = arith.constant 0 : i32
    %c0_i32_0 = arith.constant 0 : i32
    %c0_i32_1 = arith.constant 0 : i32
    return %arg0, %c0_i32, %c0_i32_0 : i32, i32, i32
  }
  func.func @transform_1(%arg0: i32) -> (i32, i32, i32) {
    %c0_i32 = arith.constant 0 : i32
    %c0_i32_0 = arith.constant 0 : i32
    %c0_i32_1 = arith.constant 0 : i32
    return %arg0, %c0_i32, %c0_i32_0 : i32, i32, i32
  }
}

</mosaic_0001>

<llo_original>
// kernel: tpu_custom_call.1
$region0: #{tpu_custom_call.1}
  #allocation0 [shape = 'u32[]', space=smem, size = 0x4, offset = 0x4, fixed_abs, tag = 'smem constant byte address 0x4 - core index']
  #allocation1 [shape = 'u32[144,128]{1,0:T(1,128)}', space=vmem, size = 0x12000, scoped, tag = 'internal scratch']
  %s0 = inlined_call_operand.hbm [shape: f32[2,2,128], index: 0, kind: input, shape index: {}]
  %s1 = inlined_call_operand.hbm [shape: f32[2,2,128], index: 1, kind: output, shape index: {}]
  %s2 = sld [smem:[#allocation0]]
  $region41: #{tpu_custom_call.1} parent=0
    _
  %s4 = ssub.s32 1, %s2
  %s5 = scalar_select 0, %s4, %s2
  $region1: #{tpu_custom_call.1} parent=0
    #allocation2 [shape = 'u8[2048]{0}', space=vmem, size = 0x800, scoped, tag = 'input window, operand 0']
    #allocation3 [shape = 's32[2]{0}', space=sflag, size = 0x8, scoped, tag = 'scoped memory for tpu_custom_call.1']
    #allocation4 [shape = 's32[2]{0}', space=sflag, size = 0x8, scoped, tag = 'scoped memory for tpu_custom_call.1']
    #allocation5 [shape = 'u8[2048]{0}', space=vmem, size = 0x800, scoped, tag = 'output window, operand 0']
    %6 = vsyncpa [#allocation3], 0
    %s7 = scalar_lea.sflag [#allocation3], 1
    %8 = vsyncpa %s7, 0
    %9 = vsyncpa [#allocation4], 0
    %s10 = scalar_lea.sflag [#allocation4], 1
    %11 = vsyncpa %s10, 0
    loop: start=0, step=1, limit=4
    $region2: #{tpu_custom_call.1} parent=1 // loop_pre_header
      _
    $region3: #{tpu_custom_call.1} parent=1 // loop_header
      %s13 = sphi 0, %s17
      %p14 = scmp.ge.s32.totalorder %s13, 4
      %s23 = sphi 0, %s25
      %s26 = sphi 0, %s23
      %s27 = sphi 0, %s26
      %s43 = sphi 0, %s27
      %s49 = sphi 0, %s51
      %s52 = sphi 0, %s49
      %s53 = sphi 0, %s52
      %s69 = sphi 0, %s53
    $region4: #{tpu_custom_call.1} parent=1 // loop_header_branch
      %16 = sbr.rel (%p14) target = $region8
    $region5: #{tpu_custom_call.1} parent=1 // loop_body
      %s18 = ssub.s32 %s13, 1
      %s19 = ssub.s32 %s13, 2
      %s20 = sadd.s32 %s13, 1
      %s21 = ssub.s32 %s13, %s20
      %p22 = scmp.eq.s32.totalorder %s21, 0
      %s24 = sadd.s32 %s23, 1
      %s25 = scalar_select %p22, %s23, %s24
      %p28 = pneg %p22
      %p29 = scmp.eq.s32.totalorder %s13, 1
      %p30 = por %p28, %p29
      %p31 = scmp.ne.s32.totalorder %s23, %s26
      %p32 = scmp.eq.s32.totalorder %s13, 0
      %p33 = por %p31, %p32
      %p34 = scmp.ne.s32.totalorder %s23, %s26
      %p35 = scmp.eq.s32.totalorder %s18, 1
      %p36 = por %p34, %p35
      %p37 = scmp.ne.s32.totalorder %s26, %s27
      %p38 = scmp.eq.s32.totalorder %s18, 0
      %p39 = por %p37, %p38
      %p40 = scmp.ne.s32.totalorder %s26, %s27
      %p41 = scmp.eq.s32.totalorder %s19, 1
      %p42 = por %p40, %p41
      %p44 = scmp.ne.s32.totalorder %s27, %s43
      %p45 = scmp.eq.s32.totalorder %s19, 0
      %p46 = por %p44, %p45
      %s47 = ssub.s32 %s13, %s20
      %p48 = scmp.eq.s32.totalorder %s47, 0
      %s50 = sadd.s32 %s49, 1
      %s51 = scalar_select %p48, %s49, %s50
      %p54 = pneg %p48
      %p55 = scmp.eq.s32.totalorder %s13, 1
      %p56 = por %p54, %p55
      %p57 = scmp.ne.s32.totalorder %s49, %s52
      %p58 = scmp.eq.s32.totalorder %s13, 0
      %p59 = por %p57, %p58
      %p60 = scmp.ne.s32.totalorder %s49, %s52
      %p61 = scmp.eq.s32.totalorder %s18, 1
      %p62 = por %p60, %p61
      %p63 = scmp.ne.s32.totalorder %s52, %s53
      %p64 = scmp.eq.s32.totalorder %s18, 0
      %p65 = por %p63, %p64
      %p66 = scmp.ne.s32.totalorder %s52, %s53
      %p67 = scmp.eq.s32.totalorder %s19, 1
      %p68 = por %p66, %p67
      %p70 = scmp.ne.s32.totalorder %s53, %s69
      %p71 = scmp.eq.s32.totalorder %s19, 0
      %p72 = por %p70, %p71
      %p73 = scmp.le.s32.totalorder 1, %s13
      %p74 = scmp.lt.s32.totalorder %s13, 3
      %p75 = pnand %p73, %p74
      %p76 = pneg %p75
      // Predicated region
      $region9: #{tpu_custom_call.1} parent=5 // pred_check
        _
      $region10: #{tpu_custom_call.1} parent=5 // pred_check_branch
        %78 = sbr.rel (%p75) target = $region12
      $region11: #{tpu_custom_call.1} parent=5 // pred_region
        %s79 = ssub.s32 %s13, 1
      $region12: #{tpu_custom_call.1} parent=5 // pred_fallthru
        _
      %p80 = scmp.lt.s32.totalorder %s13, 2
      // Predicated region
      $region13: #{tpu_custom_call.1} parent=5 // pred_check
        %p81 = pneg %p80
      $region14: #{tpu_custom_call.1} parent=5 // pred_check_branch
        %83 = sbr.rel (%p81) target = $region16
      $region15: #{tpu_custom_call.1} parent=5 // pred_region
        // Predicated region
        $region17: #{tpu_custom_call.1} parent=15 // pred_check
          %p84 = pneg %p33
        $region18: #{tpu_custom_call.1} parent=15 // pred_check_branch
          %86 = sbr.rel (%p84) target = $region20
        $region19: #{tpu_custom_call.1} parent=15 // pred_region
          %s87 = sand.u32 %s23, 1
          %s88 = scalar_lea.sflag [#allocation3], %s87
          %s89 = sand.u32 %s23, 1
          %s90 = smul.addr %s89, 2
          %s91 = scalar_lea.vmem [#allocation2], %s90
          %s93 = ssub.s32 32, 32
          %94 = vsyncadd %s88, %s93
          %s95 = smul.addr %s13, 32
          %s96 = scalar_lea.hbm %s0, %s95
          %s98 = sshll.u32 %s91, 4
          %s99 = int_to_ptr.vmem [resolvable:$true] %s98
          %101 = dma.hbm_to_vmem [thread:$0]  %s96, 32, %s99, %s88
        $region20: #{tpu_custom_call.1} parent=15 // pred_fallthru
          _
      $region16: #{tpu_custom_call.1} parent=5 // pred_fallthru
        _
      %p102 = scmp.le.s32.totalorder 1, %s13
      %p103 = scmp.lt.s32.totalorder %s13, 3
      %p104 = pnand %p102, %p103
      %p105 = pneg %p104
      // Predicated region
      $region21: #{tpu_custom_call.1} parent=5 // pred_check
        _
      $region22: #{tpu_custom_call.1} parent=5 // pred_check_branch
        %107 = sbr.rel (%p104) target = $region24
      $region23: #{tpu_custom_call.1} parent=5 // pred_region
        %s108 = ssub.s32 %s13, 1
        %s109 = sand.u32 %s26, 1
        %s110 = scalar_lea.sflag [#allocation3], %s109
        %s111 = sand.u32 %s26, 1
        %s112 = smul.addr %s111, 2
        %s113 = scalar_lea.vmem [#allocation2], %s112
        // Predicated region
        $region25: #{tpu_custom_call.1} parent=23 // pred_check
          %p114 = pneg %p39
        $region26: #{tpu_custom_call.1} parent=23 // pred_check_branch
          %116 = sbr.rel (%p114) target = $region28
        $region27: #{tpu_custom_call.1} parent=23 // pred_region
          %117 = dma.done %s110, 32
        $region28: #{tpu_custom_call.1} parent=23 // pred_fallthru
          _
        %s118 = sand.u32 %s26, 1
        %s119 = scalar_lea.sflag [#allocation3], %s118
        %s120 = sand.u32 %s26, 1
        %s121 = smul.addr %s120, 2
        %s122 = scalar_lea.vmem [#allocation2], %s121
        %p123 = pneg %p39
        %p124 = pneg %p36
        %p125 = pneg %p65
        %p126 = pneg %p62
        %s127 = sand.u32 %s52, 1
        %s128 = scalar_lea.sflag [#allocation4], %s127
        %s129 = sand.u32 %s52, 1
        %s130 = smul.addr %s129, 2
        %s131 = scalar_lea.vmem [#allocation5], %s130
        %v132 = vld [vmem:[%s113] sm:$0x3]
        %v133 = vlaneseq
        %v134 = vand.u32 %v133, 127
        %v135 = vlaneseq
        %v136 = vshrl.u32 %v135, 7
        %137 = vrot.lane.b32.xlu0 %v132, 16
        %v138 = vpop.permute.xlu0 %137
        %vm139 = vcmp.ge.s32.totalorder %v134, 16
        %vm140 = vcmask 1047554
        %v141 = vrot.slane %v138, 6
        %v142 = vsel %vm140, %v141, %v138
        %v143 = vrot.slane %v142, 6
        %v144 = vsel %vm140, %v143, %v138
        %v146 = vrot.slane %v144, 1
        %v148 = vsel %vm139, %v138, %v146
        %vm149 = vcmp.eq.s32.totalorder %v136, 0
        %vm150 = vcmp.lt.s32.totalorder %v134, 16
        %vm151 = vmand %vm149, %vm150
        %v152 = vsel %vm151, 0.0, %v148
        %153 = vrot.lane.b32.xlu0 %v132, 112
        %v154 = vpop.permute.xlu0 %153
        %vm155 = vcmp.lt.s32.totalorder %v134, 112
        %v156 = vrot.slane %v154, 6
        %v157 = vsel %vm140, %v156, %v154
        %v158 = vrot.slane %v157, 6
        %v159 = vsel %vm140, %v158, %v154
        %v161 = vrot.slane %v159, 1
        %v163 = vsel %vm155, %v154, %v161
        %vm164 = vcmp.eq.s32.totalorder %v136, 1
        %vm165 = vcmp.ge.s32.totalorder %v134, 112
        %vm166 = vmand %vm164, %vm165
        %v167 = vsel %vm166, 0.0, %v163
        %v168 = vmul.f32 %v132, 2.0
        %v169 = vadd.f32 %v152, %v168
        %v170 = vadd.f32 %v169, %v167
        %v171 = vsub.f32 %v152, %v167
        %vm172 = vcmp.lt.s32.totalorder %v134, 0
        %v173 = vsub.s32 0, %v134
        %v174 = vsel %vm172, %v173, %v134
        %v175 = vshrl.u32 %v174, 4
        %v176 = vand.u32 %v174, 15
        %v177 = vsub.s32 0, %v176
        %v178 = vsel %vm172, %v177, %v176
        %vm179 = vcmp.ne.s32.totalorder %v178, 0
        %vm180 = vcmp.lt.s32.totalorder %v178, 0
        %vm181 = vmand %vm180, %vm179
        %v182 = vadd.s32 %v178, 16
        %v183 = vsel %vm181, %v182, %v178
        %vm184 = vcmp.eq.s32.totalorder %v183, 0
        %vm185 = vcmp.eq.s32.totalorder %v183, 15
        %186 = vrot.lane.b32.xlu0 %v170, 127
        %v187 = vpop.permute.xlu0 %186
        %v188 = vsel %vm185, 0.0, %v187
        %189 = vrot.lane.b32.xlu0 %v170, 1
        %v190 = vpop.permute.xlu0 %189
        %v191 = vsel %vm184, 0.0, %v190
        %v192 = vsub.f32 %v188, %v191
        %193 = vrot.lane.b32.xlu0 %v171, 1
        %v194 = vpop.permute.xlu0 %193
        %v195 = vsel %vm184, 0.0, %v194
        %v196 = vmul.f32 %v171, 2.0
        %v197 = vadd.f32 %v195, %v196
        %198 = vrot.lane.b32.xlu0 %v171, 127
        %v199 = vpop.permute.xlu0 %198
        %v200 = vsel %vm185, 0.0, %v199
        %v201 = vadd.f32 %v197, %v200
        %v202 = vand.u32 2147483647, %v192
        %v203 = vand.u32 2147483647, %v201
        %v204 = vadd.f32 %v202, %v203
        %205 = vst [vmem:[%s131] sm:$0x3] %v204
        %s206 = sand.u32 %s52, 1
        %s207 = scalar_lea.sflag [#allocation4], %s206
        %s208 = sand.u32 %s52, 1
        %s209 = smul.addr %s208, 2
        %s210 = scalar_lea.vmem [#allocation5], %s209
        // Predicated region
        $region29: #{tpu_custom_call.1} parent=23 // pred_check
          %p211 = pneg %p62
        $region30: #{tpu_custom_call.1} parent=23 // pred_check_branch
          %213 = sbr.rel (%p211) target = $region32
        $region31: #{tpu_custom_call.1} parent=23 // pred_region
          %s215 = ssub.s32 32, 32
          %216 = vsyncadd %s207, %s215
          %s217 = smul.addr %s18, 32
          %s218 = scalar_lea.hbm %s1, %s217
          %s220 = sshll.u32 %s210, 4
          %s221 = int_to_ptr.vmem [resolvable:$true] %s220
          %223 = dma.vmem_to_hbm [thread:$0]  %s221, 32, %s218, %s207
        $region32: #{tpu_custom_call.1} parent=23 // pred_fallthru
          _
      $region24: #{tpu_custom_call.1} parent=5 // pred_fallthru
        _
      %p224 = scmp.le.s32.totalorder 2, %s13
      // Predicated region
      $region33: #{tpu_custom_call.1} parent=5 // pred_check
        %p225 = pneg %p224
      $region34: #{tpu_custom_call.1} parent=5 // pred_check_branch
        %227 = sbr.rel (%p225) target = $region36
      $region35: #{tpu_custom_call.1} parent=5 // pred_region
        %s228 = ssub.s32 %s13, 2
        // Predicated region
        $region37: #{tpu_custom_call.1} parent=35 // pred_check
          %p229 = pneg %p68
        $region38: #{tpu_custom_call.1} parent=35 // pred_check_branch
          %231 = sbr.rel (%p229) target = $region40
        $region39: #{tpu_custom_call.1} parent=35 // pred_region
          %s232 = sand.u32 %s53, 1
          %s233 = scalar_lea.sflag [#allocation4], %s232
          %s234 = sand.u32 %s53, 1
          %s235 = smul.addr %s234, 2
          %s236 = scalar_lea.vmem [#allocation5], %s235
          %237 = dma.done %s233, 32
        $region40: #{tpu_custom_call.1} parent=35 // pred_fallthru
          _
      $region36: #{tpu_custom_call.1} parent=5 // pred_fallthru
        _
    $region6: #{tpu_custom_call.1} parent=1 // loop_footer
      %s17 = sadd.s32 1, %s13
    $region7: #{tpu_custom_call.1} parent=1 // loop_footer_branch
      %12 = sbr.rel target = $region3
    $region8: #{tpu_custom_call.1} parent=1 // loop_exit
      _
    %238 = vsyncpa [#allocation3], 1
    %s239 = scalar_lea.sflag [#allocation3], 1
    %240 = vsyncpa %s239, 1
    %241 = vsyncpa [#allocation4], 1
    %s242 = scalar_lea.sflag [#allocation4], 1
    %243 = vsyncpa %s242, 1

</llo_original>
